<compile_context>
chip_gen: v6e
topology: v6e:2x2x1
jax: 0.10.0
libtpu: 0.0.40
codegen_flags: <defaults>
</compile_context>

<pallas_src>
import math
import jax
import jax.numpy as jnp
from jax.experimental import pallas as pl
from jax.experimental.pallas import tpu as pltpu

# Set to jnp.bfloat16 on v6e/v7x for higher MXU throughput (and loosen the
# 1e-5 correctness tolerance below). f32 kept as default so the tight check
# against the pure-JAX reference passes bit-for-bit-ish on all generations.
_MXU_DTYPE = jnp.float32


def _round_up(x, m):
    return ((x + m - 1) // m) * m


def _mlp_kernel(x_ref,
                w1_ref, b1_ref, w2_ref, b2_ref, w3_ref, b3_ref,
                w4_ref, b4_ref, w5_ref, b5_ref, w6_ref, b6_ref,
                o_ref):
    """sigmoid(W1@x+b1) -> ... -> sigmoid(W5@.+b5) -> W6@.+b6 on a [F, Btile] slab."""

    def dense(w_ref, b_ref, h):
        w = w_ref[...].astype(_MXU_DTYPE)
        return jnp.dot(w, h.astype(_MXU_DTYPE),
                       preferred_element_type=jnp.float32) + b_ref[...]

    h = x_ref[...]                                   # [4, Bt]
    h = jax.nn.sigmoid(dense(w1_ref, b1_ref, h))     # [S, Bt]
    h = jax.nn.sigmoid(dense(w2_ref, b2_ref, h))
    h = jax.nn.sigmoid(dense(w3_ref, b3_ref, h))
    h = jax.nn.sigmoid(dense(w4_ref, b4_ref, h))
    h = jax.nn.sigmoid(dense(w5_ref, b5_ref, h))
    o_ref[...] = dense(w6_ref, b6_ref, h).astype(o_ref.dtype)


def net_forward(U, I, V, t, params, *, max_block_b=512):
    """JAX/Pallas equivalent of Net.forward. U, I, V, t: [B, 1] float32 -> [B, 1]."""
    # Build the [4, B] input slab directly (no concat+transpose copy).
    x = jnp.stack([U[:, 0], I[:, 0], V[:, 0], t[:, 0]], axis=0).astype(jnp.float32)
    B = x.shape[1]

    # Batch tile: multiple of 128 lanes (512 covers v6e/v7x 256-multiples too).
    bt = min(max_block_b, _round_up(B, 128))
    Bp = _round_up(B, bt)
    if Bp != B:
        x = jnp.pad(x, ((0, 0), (0, Bp - B)))

    flat = []
    for w, b in params:
        flat.append(w)
        flat.append(b)

    # Weights/biases: full-array blocks, constant index_map -> stay VMEM-resident
    # across all batch tiles (no re-DMA).
    weight_specs = [pl.BlockSpec(arr.shape, lambda i: (0, 0)) for arr in flat]

    out = pl.pallas_call(
        _mlp_kernel,
        out_shape=jax.ShapeDtypeStruct((1, Bp), jnp.float32),
        grid=(Bp // bt,),
        in_specs=[pl.BlockSpec((4, bt), lambda i: (0, i))] + weight_specs,
        out_specs=pl.BlockSpec((1, bt), lambda i: (0, i)),
        compiler_params=pltpu.CompilerParams(
            dimension_semantics=("parallel",)),   # megacore split on v7x
    )(x, *flat)

    return out[:, :B].T  # [B, 1]


def init_params(size, key):
    """PyTorch nn.Linear default init: U(-1/sqrt(fan_in), +1/sqrt(fan_in)).
       Weights stored PyTorch-native [fan_out, fan_in]; biases [fan_out, 1]."""
    dims = [(size, 4), (size, size), (size, size),
            (size, size), (size, size), (1, size)]
    params = []
    for (fan_out, fan_in) in dims:
        key, kw, kb = jax.random.split(key, 3)
        bound = 1.0 / math.sqrt(fan_in)
        w = jax.random.uniform(kw, (fan_out, fan_in), jnp.float32, -bound, bound)
        b = jax.random.uniform(kb, (fan_out, 1), jnp.float32, -bound, bound)
        params.append((w, b))
    return params


def _reference_forward(U, I, V, t, params):
    """Pure-JAX reference mirroring the PyTorch forward exactly."""
    h = jnp.concatenate([U, I, V, t], axis=1).astype(jnp.float32)  # [B, 4]
    for i, (w, b) in enumerate(params):
        h = h @ w.T + b[:, 0]
        if i < len(params) - 1:
            h = jax.nn.sigmoid(h)
    return h  # [B, 1]


if __name__ == "__main__":
    size = 32                      # hidden width ("size" arg of Net)
    params = init_params(size, jax.random.PRNGKey(42))

    key = jax.random.PRNGKey(0)
    # batch=8: single padded tile; batch=600: multi-tile grid (exercises
    # pipelined path + padding slice-off).
    for batch in (8, 600):
        key, k_u, k_i, k_v, k_t = jax.random.split(key, 5)
        U = jax.random.normal(k_u, (batch, 1), jnp.float32)
        I = jax.random.normal(k_i, (batch, 1), jnp.float32)
        V = jax.random.normal(k_v, (batch, 1), jnp.float32)
        t = jax.random.normal(k_t, (batch, 1), jnp.float32)

        out = jax.block_until_ready(net_forward(U, I, V, t, params))
        ref = _reference_forward(U, I, V, t, params)

        assert out.shape == (batch, 1)
        assert jnp.allclose(out, ref, atol=1e-5, rtol=1e-5), \
            f"mismatch vs reference at batch={batch}"

    # TODO(synk): Net.predict uses torch.autograd.grad w.r.t. inputs; the JAX
    # analogue is jax.grad over net_forward (outside the kernel), not an
    # in-kernel op.
    print("KERNEL_OK")
</pallas_src>

<mosaic_0001>
module attributes {stable_mosaic.version = 11 : i64} {
  func.func @_mlp_kernel(%arg0: i32, %arg1: memref<4x128xf32, #tpu.memory_space<vmem>>, %arg2: memref<32x4xf32, #tpu.memory_space<vmem>>, %arg3: memref<32x1xf32, #tpu.memory_space<vmem>>, %arg4: memref<32x32xf32, #tpu.memory_space<vmem>>, %arg5: memref<32x1xf32, #tpu.memory_space<vmem>>, %arg6: memref<32x32xf32, #tpu.memory_space<vmem>>, %arg7: memref<32x1xf32, #tpu.memory_space<vmem>>, %arg8: memref<32x32xf32, #tpu.memory_space<vmem>>, %arg9: memref<32x1xf32, #tpu.memory_space<vmem>>, %arg10: memref<32x32xf32, #tpu.memory_space<vmem>>, %arg11: memref<32x1xf32, #tpu.memory_space<vmem>>, %arg12: memref<1x32xf32, #tpu.memory_space<vmem>>, %arg13: memref<1x1xf32, #tpu.memory_space<vmem>>, %arg14: memref<1x128xf32, #tpu.memory_space<vmem>>) attributes {dimension_semantics = [#tpu.dimension_semantics<parallel>], iteration_bounds = array<i64: 1>, scalar_prefetch = 0 : i64, scratch_operands = 0 : i64, tpu.core_type = #tpu.core_type<tc>, window_params = [{transform_indices = @transform_0, window_bounds = array<i64: 4, 128>}, {pipeline_mode = #tpu.pipeline_mode<synchronous>, transform_indices = @transform_1, window_bounds = array<i64: 32, 4>}, {pipeline_mode = #tpu.pipeline_mode<synchronous>, transform_indices = @transform_2, window_bounds = array<i64: 32, 1>}, {pipeline_mode = #tpu.pipeline_mode<synchronous>, transform_indices = @transform_3, window_bounds = array<i64: 32, 32>}, {pipeline_mode = #tpu.pipeline_mode<synchronous>, transform_indices = @transform_4, window_bounds = array<i64: 32, 1>}, {pipeline_mode = #tpu.pipeline_mode<synchronous>, transform_indices = @transform_5, window_bounds = array<i64: 32, 32>}, {pipeline_mode = #tpu.pipeline_mode<synchronous>, transform_indices = @transform_6, window_bounds = array<i64: 32, 1>}, {pipeline_mode = #tpu.pipeline_mode<synchronous>, transform_indices = @transform_7, window_bounds = array<i64: 32, 32>}, {pipeline_mode = #tpu.pipeline_mode<synchronous>, transform_indices = @transform_8, window_bounds = array<i64: 32, 1>}, {pipeline_mode = #tpu.pipeline_mode<synchronous>, transform_indices = @transform_9, window_bounds = array<i64: 32, 32>}, {pipeline_mode = #tpu.pipeline_mode<synchronous>, transform_indices = @transform_10, window_bounds = array<i64: 32, 1>}, {pipeline_mode = #tpu.pipeline_mode<synchronous>, transform_indices = @transform_11, window_bounds = array<i64: 1, 32>}, {pipeline_mode = #tpu.pipeline_mode<synchronous>, transform_indices = @transform_12, window_bounds = array<i64: 1, 1>}, {transform_indices = @transform_13, window_bounds = array<i64: 1, 128>}]} {
    %c0 = arith.constant 0 : index
    %c0_0 = arith.constant 0 : index
    %0 = vector.load %arg1[%c0, %c0_0] : memref<4x128xf32, #tpu.memory_space<vmem>>, vector<4x128xf32>
    %c0_1 = arith.constant 0 : index
    %c0_2 = arith.constant 0 : index
    %1 = vector.load %arg2[%c0_1, %c0_2] : memref<32x4xf32, #tpu.memory_space<vmem>>, vector<32x4xf32>
    %cst = arith.constant dense<0.000000e+00> : vector<32x128xf32>
    %2 = tpu.matmul %1, %0, %cst {dimension_numbers = #tpu.dot_dimension_numbers<[1], [0], [0], [1], [0, 0, 1, 1], [], []>} : vector<32x4xf32>, vector<4x128xf32>, vector<32x128xf32> -> vector<32x128xf32>
    %c0_3 = arith.constant 0 : index
    %c0_4 = arith.constant 0 : index
    %3 = vector.load %arg3[%c0_3, %c0_4] : memref<32x1xf32, #tpu.memory_space<vmem>>, vector<32x1xf32>
    %4 = vector.broadcast %3 : vector<32x1xf32> to vector<32x128xf32>
    %5 = arith.addf %2, %4 : vector<32x128xf32>
    %6 = arith.negf %5 : vector<32x128xf32>
    %7 = math.exp %6 : vector<32x128xf32>
    %cst_5 = arith.constant 1.000000e+00 : f32
    %8 = vector.broadcast %cst_5 : f32 to vector<32x128xf32>
    %9 = arith.addf %8, %7 : vector<32x128xf32>
    %10 = arith.divf %8, %9 : vector<32x128xf32>
    %c0_6 = arith.constant 0 : index
    %c0_7 = arith.constant 0 : index
    %11 = vector.load %arg4[%c0_6, %c0_7] : memref<32x32xf32, #tpu.memory_space<vmem>>, vector<32x32xf32>
    %cst_8 = arith.constant dense<0.000000e+00> : vector<32x128xf32>
    %12 = tpu.matmul %11, %10, %cst_8 {dimension_numbers = #tpu.dot_dimension_numbers<[1], [0], [0], [1], [0, 0, 1, 1], [], []>} : vector<32x32xf32>, vector<32x128xf32>, vector<32x128xf32> -> vector<32x128xf32>
    %c0_9 = arith.constant 0 : index
    %c0_10 = arith.constant 0 : index
    %13 = vector.load %arg5[%c0_9, %c0_10] : memref<32x1xf32, #tpu.memory_space<vmem>>, vector<32x1xf32>
    %14 = vector.broadcast %13 : vector<32x1xf32> to vector<32x128xf32>
    %15 = arith.addf %12, %14 : vector<32x128xf32>
    %16 = arith.negf %15 : vector<32x128xf32>
    %17 = math.exp %16 : vector<32x128xf32>
    %cst_11 = arith.constant 1.000000e+00 : f32
    %18 = vector.broadcast %cst_11 : f32 to vector<32x128xf32>
    %19 = arith.addf %18, %17 : vector<32x128xf32>
    %20 = arith.divf %18, %19 : vector<32x128xf32>
    %c0_12 = arith.constant 0 : index
    %c0_13 = arith.constant 0 : index
    %21 = vector.load %arg6[%c0_12, %c0_13] : memref<32x32xf32, #tpu.memory_space<vmem>>, vector<32x32xf32>
    %cst_14 = arith.constant dense<0.000000e+00> : vector<32x128xf32>
    %22 = tpu.matmul %21, %20, %cst_14 {dimension_numbers = #tpu.dot_dimension_numbers<[1], [0], [0], [1], [0, 0, 1, 1], [], []>} : vector<32x32xf32>, vector<32x128xf32>, vector<32x128xf32> -> vector<32x128xf32>
    %c0_15 = arith.constant 0 : index
    %c0_16 = arith.constant 0 : index
    %23 = vector.load %arg7[%c0_15, %c0_16] : memref<32x1xf32, #tpu.memory_space<vmem>>, vector<32x1xf32>
    %24 = vector.broadcast %23 : vector<32x1xf32> to vector<32x128xf32>
    %25 = arith.addf %22, %24 : vector<32x128xf32>
    %26 = arith.negf %25 : vector<32x128xf32>
    %27 = math.exp %26 : vector<32x128xf32>
    %cst_17 = arith.constant 1.000000e+00 : f32
    %28 = vector.broadcast %cst_17 : f32 to vector<32x128xf32>
    %29 = arith.addf %28, %27 : vector<32x128xf32>
    %30 = arith.divf %28, %29 : vector<32x128xf32>
    %c0_18 = arith.constant 0 : index
    %c0_19 = arith.constant 0 : index
    %31 = vector.load %arg8[%c0_18, %c0_19] : memref<32x32xf32, #tpu.memory_space<vmem>>, vector<32x32xf32>
    %cst_20 = arith.constant dense<0.000000e+00> : vector<32x128xf32>
    %32 = tpu.matmul %31, %30, %cst_20 {dimension_numbers = #tpu.dot_dimension_numbers<[1], [0], [0], [1], [0, 0, 1, 1], [], []>} : vector<32x32xf32>, vector<32x128xf32>, vector<32x128xf32> -> vector<32x128xf32>
    %c0_21 = arith.constant 0 : index
    %c0_22 = arith.constant 0 : index
    %33 = vector.load %arg9[%c0_21, %c0_22] : memref<32x1xf32, #tpu.memory_space<vmem>>, vector<32x1xf32>
    %34 = vector.broadcast %33 : vector<32x1xf32> to vector<32x128xf32>
    %35 = arith.addf %32, %34 : vector<32x128xf32>
    %36 = arith.negf %35 : vector<32x128xf32>
    %37 = math.exp %36 : vector<32x128xf32>
    %cst_23 = arith.constant 1.000000e+00 : f32
    %38 = vector.broadcast %cst_23 : f32 to vector<32x128xf32>
    %39 = arith.addf %38, %37 : vector<32x128xf32>
    %40 = arith.divf %38, %39 : vector<32x128xf32>
    %c0_24 = arith.constant 0 : index
    %c0_25 = arith.constant 0 : index
    %41 = vector.load %arg10[%c0_24, %c0_25] : memref<32x32xf32, #tpu.memory_space<vmem>>, vector<32x32xf32>
    %cst_26 = arith.constant dense<0.000000e+00> : vector<32x128xf32>
    %42 = tpu.matmul %41, %40, %cst_26 {dimension_numbers = #tpu.dot_dimension_numbers<[1], [0], [0], [1], [0, 0, 1, 1], [], []>} : vector<32x32xf32>, vector<32x128xf32>, vector<32x128xf32> -> vector<32x128xf32>
    %c0_27 = arith.constant 0 : index
    %c0_28 = arith.constant 0 : index
    %43 = vector.load %arg11[%c0_27, %c0_28] : memref<32x1xf32, #tpu.memory_space<vmem>>, vector<32x1xf32>
    %44 = vector.broadcast %43 : vector<32x1xf32> to vector<32x128xf32>
    %45 = arith.addf %42, %44 : vector<32x128xf32>
    %46 = arith.negf %45 : vector<32x128xf32>
    %47 = math.exp %46 : vector<32x128xf32>
    %cst_29 = arith.constant 1.000000e+00 : f32
    %48 = vector.broadcast %cst_29 : f32 to vector<32x128xf32>
    %49 = arith.addf %48, %47 : vector<32x128xf32>
    %50 = arith.divf %48, %49 : vector<32x128xf32>
    %c0_30 = arith.constant 0 : index
    %c0_31 = arith.constant 0 : index
    %51 = vector.load %arg12[%c0_30, %c0_31] : memref<1x32xf32, #tpu.memory_space<vmem>>, vector<1x32xf32>
    %cst_32 = arith.constant dense<0.000000e+00> : vector<1x128xf32>
    %52 = tpu.matmul %51, %50, %cst_32 {dimension_numbers = #tpu.dot_dimension_numbers<[1], [0], [0], [1], [0, 0, 1, 1], [], []>} : vector<1x32xf32>, vector<32x128xf32>, vector<1x128xf32> -> vector<1x128xf32>
    %c0_33 = arith.constant 0 : index
    %c0_34 = arith.constant 0 : index
    %53 = vector.load %arg13[%c0_33, %c0_34] : memref<1x1xf32, #tpu.memory_space<vmem>>, vector<1x1xf32>
    %54 = vector.broadcast %53 : vector<1x1xf32> to vector<1x128xf32>
    %55 = arith.addf %52, %54 : vector<1x128xf32>
    %c0_35 = arith.constant 0 : index
    %c0_36 = arith.constant 0 : index
    %56 = vector.load %arg14[%c0_35, %c0_36] : memref<1x128xf32, #tpu.memory_space<vmem>>, vector<1x128xf32>
    tpu.vector_store %arg14[%c0_35, %c0_36], %55 {strides = array<i32>} : memref<1x128xf32, #tpu.memory_space<vmem>>, vector<1x128xf32>,
    return
  }
  func.func @transform_0(%arg0: i32) -> (i32, i32) {
    %c0_i32 = arith.constant 0 : i32
    %c0_i32_0 = arith.constant 0 : i32
    return %c0_i32, %arg0 : i32, i32
  }
  func.func @transform_1(%arg0: i32) -> (i32, i32) {
    %c0_i32 = arith.constant 0 : i32
    %c0_i32_0 = arith.constant 0 : i32
    %c0_i32_1 = arith.constant 0 : i32
    return %c0_i32, %c0_i32_0 : i32, i32
  }
  func.func @transform_2(%arg0: i32) -> (i32, i32) {
    %c0_i32 = arith.constant 0 : i32
    %c0_i32_0 = arith.constant 0 : i32
    %c0_i32_1 = arith.constant 0 : i32
    return %c0_i32, %c0_i32_0 : i32, i32
  }
  func.func @transform_3(%arg0: i32) -> (i32, i32) {
    %c0_i32 = arith.constant 0 : i32
    %c0_i32_0 = arith.constant 0 : i32
    %c0_i32_1 = arith.constant 0 : i32
    return %c0_i32, %c0_i32_0 : i32, i32
  }
  func.func @transform_4(%arg0: i32) -> (i32, i32) {
    %c0_i32 = arith.constant 0 : i32
    %c0_i32_0 = arith.constant 0 : i32
    %c0_i32_1 = arith.constant 0 : i32
    return %c0_i32, %c0_i32_0 : i32, i32
  }
  func.func @transform_5(%arg0: i32) -> (i32, i32) {
    %c0_i32 = arith.constant 0 : i32
    %c0_i32_0 = arith.constant 0 : i32
    %c0_i32_1 = arith.constant 0 : i32
    return %c0_i32, %c0_i32_0 : i32, i32
  }
  func.func @transform_6(%arg0: i32) -> (i32, i32) {
    %c0_i32 = arith.constant 0 : i32
    %c0_i32_0 = arith.constant 0 : i32
    %c0_i32_1 = arith.constant 0 : i32
    return %c0_i32, %c0_i32_0 : i32, i32
  }
  func.func @transform_7(%arg0: i32) -> (i32, i32) {
    %c0_i32 = arith.constant 0 : i32
    %c0_i32_0 = arith.constant 0 : i32
    %c0_i32_1 = arith.constant 0 : i32
    return %c0_i32, %c0_i32_0 : i32, i32
  }
  func.func @transform_8(%arg0: i32) -> (i32, i32) {
    %c0_i32 = arith.constant 0 : i32
    %c0_i32_0 = arith.constant 0 : i32
    %c0_i32_1 = arith.constant 0 : i32
    return %c0_i32, %c0_i32_0 : i32, i32
  }
  func.func @transform_9(%arg0: i32) -> (i32, i32) {
    %c0_i32 = arith.constant 0 : i32
    %c0_i32_0 = arith.constant 0 : i32
    %c0_i32_1 = arith.constant 0 : i32
    return %c0_i32, %c0_i32_0 : i32, i32
  }
  func.func @transform_10(%arg0: i32) -> (i32, i32) {
    %c0_i32 = arith.constant 0 : i32
    %c0_i32_0 = arith.constant 0 : i32
    %c0_i32_1 = arith.constant 0 : i32
    return %c0_i32, %c0_i32_0 : i32, i32
  }
  func.func @transform_11(%arg0: i32) -> (i32, i32) {
    %c0_i32 = arith.constant 0 : i32
    %c0_i32_0 = arith.constant 0 : i32
    %c0_i32_1 = arith.constant 0 : i32
    return %c0_i32, %c0_i32_0 : i32, i32
  }
  func.func @transform_12(%arg0: i32) -> (i32, i32) {
    %c0_i32 = arith.constant 0 : i32
    %c0_i32_0 = arith.constant 0 : i32
    %c0_i32_1 = arith.constant 0 : i32
    return %c0_i32, %c0_i32_0 : i32, i32
  }
  func.func @transform_13(%arg0: i32) -> (i32, i32) {
    %c0_i32 = arith.constant 0 : i32
    %c0_i32_0 = arith.constant 0 : i32
    return %c0_i32, %arg0 : i32, i32
  }
}

</mosaic_0001>

<llo_original>
// kernel: tpu_custom_call.1
$region0: #{tpu_custom_call.1}
  #allocation0 [shape = 'u32[]', space=smem, size = 0x4, offset = 0x4, fixed_abs, tag = 'smem constant byte address 0x4 - core index']
  #allocation1 [shape = 'u32[144,128]{1,0:T(1,128)}', space=vmem, size = 0x12000, scoped, tag = 'internal scratch']
  #allocation2 [shape = 'f32[1,1]{1,0:T(1,128)S(1)}', space=vmem, size = 0x200, scoped, tag = 'scoped memory for tpu_custom_call.1']
  %s0 = inlined_call_operand.vmem [shape: f32[4,128], index: 0, kind: input, shape index: {}]
  %s1 = inlined_call_operand.vmem [shape: f32[32,4], index: 1, kind: input, shape index: {}]
  %s2 = inlined_call_operand.vmem [shape: f32[32,1], index: 2, kind: input, shape index: {}]
  %s3 = inlined_call_operand.vmem [shape: f32[32,32], index: 3, kind: input, shape index: {}]
  %s4 = inlined_call_operand.vmem [shape: f32[32,1], index: 4, kind: input, shape index: {}]
  %s5 = inlined_call_operand.vmem [shape: f32[32,32], index: 5, kind: input, shape index: {}]
  %s6 = inlined_call_operand.vmem [shape: f32[32,1], index: 6, kind: input, shape index: {}]
  %s7 = inlined_call_operand.vmem [shape: f32[32,32], index: 7, kind: input, shape index: {}]
  %s8 = inlined_call_operand.vmem [shape: f32[32,1], index: 8, kind: input, shape index: {}]
  %s9 = inlined_call_operand.vmem [shape: f32[32,32], index: 9, kind: input, shape index: {}]
  %s10 = inlined_call_operand.vmem [shape: f32[32,1], index: 10, kind: input, shape index: {}]
  %s11 = inlined_call_operand.vmem [shape: f32[1,32], index: 11, kind: input, shape index: {}]
  %s12 = inlined_call_operand.<no memory space> [shape: f32[1,1], index: 12, kind: input, shape index: {}]
  %s13 = inlined_call_operand.hbm [shape: f32[1,128], index: 13, kind: output, shape index: {}]
  %s14 = sld [smem:[#allocation0]]
  $region62: #{tpu_custom_call.1} parent=0
    _
  %s16 = ssub.s32 1, %s14
  %s17 = scalar_select 0, %s16, %s14
  %v18 = vstv %s12
  %19 = vst [vmem:[#allocation2] sm:$0x1] %v18
  $region1: #{tpu_custom_call.1} parent=0
    #allocation3 [shape = 'u8[512]{0}', space=vmem, size = 0x400, scoped, tag = 'output window, operand 0, single buffered']
    #allocation4 [shape = 's32[1]{0}', space=sflag, size = 0x4, scoped, tag = 'scoped memory for tpu_custom_call.1']
    %20 = vsyncpa [#allocation4], 0
    // Predicated region
    $region2: #{tpu_custom_call.1} parent=1 // pred_check
      _
    $region3: #{tpu_custom_call.1} parent=1 // pred_check_branch
      %22 = sbr.rel (0) target = $region5
    $region4: #{tpu_custom_call.1} parent=1 // pred_region
      _
    $region5: #{tpu_custom_call.1} parent=1 // pred_fallthru
      _
    // Predicated region
    $region6: #{tpu_custom_call.1} parent=1 // pred_check
      _
    $region7: #{tpu_custom_call.1} parent=1 // pred_check_branch
      %24 = sbr.rel (0) target = $region9
    $region8: #{tpu_custom_call.1} parent=1 // pred_region
      _
    $region9: #{tpu_custom_call.1} parent=1 // pred_fallthru
      _
    // Predicated region
    $region10: #{tpu_custom_call.1} parent=1 // pred_check
      _
    $region11: #{tpu_custom_call.1} parent=1 // pred_check_branch
      %26 = sbr.rel (0) target = $region13
    $region12: #{tpu_custom_call.1} parent=1 // pred_region
      _
    $region13: #{tpu_custom_call.1} parent=1 // pred_fallthru
      _
    // Predicated region
    $region14: #{tpu_custom_call.1} parent=1 // pred_check
      _
    $region15: #{tpu_custom_call.1} parent=1 // pred_check_branch
      %28 = sbr.rel (0) target = $region17
    $region16: #{tpu_custom_call.1} parent=1 // pred_region
      _
    $region17: #{tpu_custom_call.1} parent=1 // pred_fallthru
      _
    // Predicated region
    $region18: #{tpu_custom_call.1} parent=1 // pred_check
      _
    $region19: #{tpu_custom_call.1} parent=1 // pred_check_branch
      %30 = sbr.rel (0) target = $region21
    $region20: #{tpu_custom_call.1} parent=1 // pred_region
      _
    $region21: #{tpu_custom_call.1} parent=1 // pred_fallthru
      _
    // Predicated region
    $region22: #{tpu_custom_call.1} parent=1 // pred_check
      _
    $region23: #{tpu_custom_call.1} parent=1 // pred_check_branch
      %32 = sbr.rel (0) target = $region25
    $region24: #{tpu_custom_call.1} parent=1 // pred_region
      _
    $region25: #{tpu_custom_call.1} parent=1 // pred_fallthru
      _
    // Predicated region
    $region26: #{tpu_custom_call.1} parent=1 // pred_check
      _
    $region27: #{tpu_custom_call.1} parent=1 // pred_check_branch
      %34 = sbr.rel (0) target = $region29
    $region28: #{tpu_custom_call.1} parent=1 // pred_region
      _
    $region29: #{tpu_custom_call.1} parent=1 // pred_fallthru
      _
    // Predicated region
    $region30: #{tpu_custom_call.1} parent=1 // pred_check
      _
    $region31: #{tpu_custom_call.1} parent=1 // pred_check_branch
      %36 = sbr.rel (0) target = $region33
    $region32: #{tpu_custom_call.1} parent=1 // pred_region
      _
    $region33: #{tpu_custom_call.1} parent=1 // pred_fallthru
      _
    // Predicated region
    $region34: #{tpu_custom_call.1} parent=1 // pred_check
      _
    $region35: #{tpu_custom_call.1} parent=1 // pred_check_branch
      %38 = sbr.rel (0) target = $region37
    $region36: #{tpu_custom_call.1} parent=1 // pred_region
      _
    $region37: #{tpu_custom_call.1} parent=1 // pred_fallthru
      _
    // Predicated region
    $region38: #{tpu_custom_call.1} parent=1 // pred_check
      _
    $region39: #{tpu_custom_call.1} parent=1 // pred_check_branch
      %40 = sbr.rel (0) target = $region41
    $region40: #{tpu_custom_call.1} parent=1 // pred_region
      _
    $region41: #{tpu_custom_call.1} parent=1 // pred_fallthru
      _
    // Predicated region
    $region42: #{tpu_custom_call.1} parent=1 // pred_check
      _
    $region43: #{tpu_custom_call.1} parent=1 // pred_check_branch
      %42 = sbr.rel (0) target = $region45
    $region44: #{tpu_custom_call.1} parent=1 // pred_region
      _
    $region45: #{tpu_custom_call.1} parent=1 // pred_fallthru
      _
    // Predicated region
    $region46: #{tpu_custom_call.1} parent=1 // pred_check
      _
    $region47: #{tpu_custom_call.1} parent=1 // pred_check_branch
      %44 = sbr.rel (0) target = $region49
    $region48: #{tpu_custom_call.1} parent=1 // pred_region
      _
    $region49: #{tpu_custom_call.1} parent=1 // pred_fallthru
      _
    // Predicated region
    $region50: #{tpu_custom_call.1} parent=1 // pred_check
      _
    $region51: #{tpu_custom_call.1} parent=1 // pred_check_branch
      %46 = sbr.rel (0) target = $region53
    $region52: #{tpu_custom_call.1} parent=1 // pred_region
      _
    $region53: #{tpu_custom_call.1} parent=1 // pred_fallthru
      _
    %v47 = vld [vmem:[%s0] sm:$0xf]
    %v48 = vld [vmem:[%s1] sm:$0xff]
    %v49 = vld [vmem:[%s1 + $0x8] sm:$0xff]
    %v50 = vld [vmem:[%s1 + $0x10] sm:$0xff]
    %v51 = vld [vmem:[%s1 + $0x18] sm:$0xff]
    %v52 = vld [vmem:[%s2] sm:$0xff]
    %v53 = vld [vmem:[%s2 + $0x8] sm:$0xff]
    %v54 = vld [vmem:[%s2 + $0x10] sm:$0xff]
    %v55 = vld [vmem:[%s2 + $0x18] sm:$0xff]
    %57 = vset.pattern.permute.xlu0 0
    %58 = vperm.xlu0 %57, %v52
    %v59 = vpop.permute.xlu0 %58
    %62 = vset.pattern.permute.xlu0 0
    %63 = vperm.xlu0 %62, %v53
    %v64 = vpop.permute.xlu0 %63
    %67 = vset.pattern.permute.xlu0 0
    %68 = vperm.xlu0 %67, %v54
    %v69 = vpop.permute.xlu0 %68
    %72 = vset.pattern.permute.xlu0 0
    %73 = vperm.xlu0 %72, %v55
    %v74 = vpop.permute.xlu0 %73
    %vm76 = vcmask 31744
    %v78 = vsel %vm76, %v48, 0
    %v81 = vsel %vm76, %v49, 0
    %v84 = vsel %vm76, %v50, 0
    %v87 = vsel %vm76, %v51, 0
    %vm89 = vcmask 1043456
    %v91 = vsel %vm89, %v47, 0
    %93 = vmatprep.subr.mxu0 0.0
    %94 = vmatpush1.msra.mxu0 0.0
    %95 = vmatprep.subr.mxu0 0.0
    %96 = vmatpush1.msra.mxu0 0.0
    %97 = vmatprep.subr.mxu0 0.0
    %98 = vmatpush1.msra.mxu0 0.0
    %99 = vmatprep.subr.mxu0 0.0
    %100 = vmatpush1.msra.mxu0 0.0
    %101 = vmatprep.subr.mxu0 0.0
    %102 = vmatpush1.msra.mxu0 0.0
    %103 = vmatprep.subr.mxu0 0.0
    %104 = vmatpush1.msra.mxu0 0.0
    %105 = vmatprep.subr.mxu0 0.0
    %106 = vmatpush1.msra.mxu0 0.0
    %107 = vmatprep.subr.mxu0 0.0
    %108 = vmatpush1.msra.mxu0 0.0
    %109 = vmatprep.subr.mxu0 0.0
    %110 = vmatpush1.msra.mxu0 0.0
    %111 = vmatprep.subr.mxu0 0.0
    %112 = vmatpush1.msra.mxu0 0.0
    %113 = vmatprep.subr.mxu0 0.0
    %114 = vmatpush1.msra.mxu0 0.0
    %115 = vmatprep.subr.mxu0 0.0
    %116 = vmatpush1.msra.mxu0 0.0
    %117 = vmatprep.subr.mxu0 0.0
    %118 = vmatpush1.msra.mxu0 0.0
    %119 = vmatprep.subr.mxu0 0.0
    %120 = vmatpush1.msra.mxu0 0.0
    %121 = vmatprep.subr.mxu0 0.0
    %122 = vmatpush1.msra.mxu0 0.0
    %123 = vmatprep.subr.mxu0 0.0
    %124 = vmatpush1.msra.mxu0 %v91
    %125 = vmatprep.subr.mxu0 0.0
    %126 = vmatpush2.msra.mxu0 0.0
    %127 = vmatprep.subr.mxu0 0.0
    %128 = vmatpush2.msra.mxu0 0.0
    %129 = vmatprep.subr.mxu0 0.0
    %130 = vmatpush2.msra.mxu0 0.0
    %131 = vmatprep.subr.mxu0 0.0
    %132 = vmatpush2.msra.mxu0 0.0
    %133 = vmatprep.subr.mxu0 0.0
    %134 = vmatpush2.msra.mxu0 0.0
    %135 = vmatprep.subr.mxu0 0.0
    %136 = vmatpush2.msra.mxu0 0.0
    %137 = vmatprep.subr.mxu0 0.0
    %138 = vmatpush2.msra.mxu0 0.0
    %139 = vmatprep.subr.mxu0 0.0
    %140 = vmatpush2.msra.mxu0 0.0
    %141 = vmatprep.subr.mxu0 0.0
    %142 = vmatpush2.msra.mxu0 0.0
    %143 = vmatprep.subr.mxu0 0.0
    %144 = vmatpush2.msra.mxu0 0.0
    %145 = vmatprep.subr.mxu0 0.0
    %146 = vmatpush2.msra.mxu0 0.0
    %147 = vmatprep.subr.mxu0 0.0
    %148 = vmatpush2.msra.mxu0 0.0
    %149 = vmatprep.subr.mxu0 0.0
    %150 = vmatpush2.msra.mxu0 0.0
    %151 = vmatprep.subr.mxu0 0.0
    %152 = vmatpush2.msra.mxu0 0.0
    %153 = vmatprep.subr.mxu0 0.0
    %154 = vmatpush2.msra.mxu0 0.0
    %155 = vmatprep.subr.mxu0 0.0
    %156 = vmatpush2.msra.mxu0 0.0
    %157 = vmatprep.mubr.f32.mxu0 0.0
    %158 = vmatmul.mubr.f32.gmra.mxu0 %v78
    %v159 = vpop.f32.mrf.mxu0
    %v160 = vadd.f32 %v59, %v159
    %v161 = vpop.f32.mrf.mxu0
    %162 = vmatprep.mubr.f32.mxu0 0.0
    %163 = vmatmul.mubr.f32.gmra.mxu0 %v81
    %v164 = vpop.f32.mrf.mxu0
    %v165 = vadd.f32 %v64, %v164
    %v166 = vpop.f32.mrf.mxu0
    %167 = vmatprep.mubr.f32.mxu0 0.0
    %168 = vmatmul.mubr.f32.gmra.mxu0 %v84
    %v169 = vpop.f32.mrf.mxu0
    %v170 = vadd.f32 %v69, %v169
    %v171 = vpop.f32.mrf.mxu0
    %172 = vmatprep.mubr.f32.mxu0 0.0
    %173 = vmatmul.mubr.f32.gmra.mxu0 %v87
    %v174 = vpop.f32.mrf.mxu0
    %v175 = vadd.f32 %v74, %v174
    %v176 = vpop.f32.mrf.mxu0
    %177 = vdwg.mxu0
    %v178 = vxor.u32 %v160, 2147483648
    %v179 = vxor.u32 %v165, 2147483648
    %v180 = vxor.u32 %v170, 2147483648
    %v181 = vxor.u32 %v175, 2147483648
    %v182 = vmul.f32 %v178, 1.442695
    %v183 = vpow.pop %v182
    %v184 = vmul.f32 %v179, 1.442695
    %v185 = vpow.pop %v184
    %v186 = vmul.f32 %v180, 1.442695
    %v187 = vpow.pop %v186
    %v188 = vmul.f32 %v181, 1.442695
    %v189 = vpow.pop %v188
    %v190 = vadd.f32 %v183, 1.0
    %v191 = vadd.f32 %v185, 1.0
    %v192 = vadd.f32 %v187, 1.0
    %v193 = vadd.f32 %v189, 1.0
    %v194 = vrcp.pop %v190
    %v195 = vmul.f32 1.0, %v194
    %v196 = vrcp.pop %v191
    %v197 = vmul.f32 1.0, %v196
    %v198 = vrcp.pop %v192
    %v199 = vmul.f32 1.0, %v198
    %v200 = vrcp.pop %v193
    %v201 = vmul.f32 1.0, %v200
    %v202 = vld [vmem:[%s3] sm:$0xff]
    %v203 = vld [vmem:[%s3 + $0x8] sm:$0xff]
    %v204 = vld [vmem:[%s3 + $0x10] sm:$0xff]
    %v205 = vld [vmem:[%s3 + $0x18] sm:$0xff]
    %v206 = vld [vmem:[%s4] sm:$0xff]
    %v207 = vld [vmem:[%s4 + $0x8] sm:$0xff]
    %v208 = vld [vmem:[%s4 + $0x10] sm:$0xff]
    %v209 = vld [vmem:[%s4 + $0x18] sm:$0xff]
    %211 = vset.pattern.permute.xlu0 0
    %212 = vperm.xlu0 %211, %v206
    %v213 = vpop.permute.xlu0 %212
    %216 = vset.pattern.permute.xlu0 0
    %217 = vperm.xlu0 %216, %v207
    %v218 = vpop.permute.xlu0 %217
    %221 = vset.pattern.permute.xlu0 0
    %222 = vperm.xlu0 %221, %v208
    %v223 = vpop.permute.xlu0 %222
    %226 = vset.pattern.permute.xlu0 0
    %227 = vperm.xlu0 %226, %v209
    %v228 = vpop.permute.xlu0 %227
    %vm230 = vcmask 261120
    %v232 = vsel %vm230, %v202, 0
    %v235 = vsel %vm230, %v203, 0
    %v238 = vsel %vm230, %v204, 0
    %v241 = vsel %vm230, %v205, 0
    %243 = vmatprep.subr.mxu0 0.0
    %244 = vmatpush1.msra.mxu0 0.0
    %245 = vmatprep.subr.mxu0 0.0
    %246 = vmatpush1.msra.mxu0 0.0
    %247 = vmatprep.subr.mxu0 0.0
    %248 = vmatpush1.msra.mxu0 0.0
    %249 = vmatprep.subr.mxu0 0.0
    %250 = vmatpush1.msra.mxu0 0.0
    %251 = vmatprep.subr.mxu0 0.0
    %252 = vmatpush1.msra.mxu0 0.0
    %253 = vmatprep.subr.mxu0 0.0
    %254 = vmatpush1.msra.mxu0 0.0
    %255 = vmatprep.subr.mxu0 0.0
    %256 = vmatpush1.msra.mxu0 0.0
    %257 = vmatprep.subr.mxu0 0.0
    %258 = vmatpush1.msra.mxu0 0.0
    %259 = vmatprep.subr.mxu0 0.0
    %260 = vmatpush1.msra.mxu0 0.0
    %261 = vmatprep.subr.mxu0 0.0
    %262 = vmatpush1.msra.mxu0 0.0
    %263 = vmatprep.subr.mxu0 0.0
    %264 = vmatpush1.msra.mxu0 0.0
    %265 = vmatprep.subr.mxu0 0.0
    %266 = vmatpush1.msra.mxu0 0.0
    %267 = vmatprep.subr.mxu0 0.0
    %268 = vmatpush1.msra.mxu0 %v201
    %269 = vmatprep.subr.mxu0 0.0
    %270 = vmatpush1.msra.mxu0 %v199
    %271 = vmatprep.subr.mxu0 0.0
    %272 = vmatpush1.msra.mxu0 %v197
    %273 = vmatprep.subr.mxu0 0.0
    %274 = vmatpush1.msra.mxu0 %v195
    %275 = vmatprep.subr.mxu0 0.0
    %276 = vmatpush2.msra.mxu0 0.0
    %277 = vmatprep.subr.mxu0 0.0
    %278 = vmatpush2.msra.mxu0 0.0
    %279 = vmatprep.subr.mxu0 0.0
    %280 = vmatpush2.msra.mxu0 0.0
    %281 = vmatprep.subr.mxu0 0.0
    %282 = vmatpush2.msra.mxu0 0.0
    %283 = vmatprep.subr.mxu0 0.0
    %284 = vmatpush2.msra.mxu0 0.0
    %285 = vmatprep.subr.mxu0 0.0
    %286 = vmatpush2.msra.mxu0 0.0
    %287 = vmatprep.subr.mxu0 0.0
    %288 = vmatpush2.msra.mxu0 0.0
    %289 = vmatprep.subr.mxu0 0.0
    %290 = vmatpush2.msra.mxu0 0.0
    %291 = vmatprep.subr.mxu0 0.0
    %292 = vmatpush2.msra.mxu0 0.0
    %293 = vmatprep.subr.mxu0 0.0
    %294 = vmatpush2.msra.mxu0 0.0
    %295 = vmatprep.subr.mxu0 0.0
    %296 = vmatpush2.msra.mxu0 0.0
    %297 = vmatprep.subr.mxu0 0.0
    %298 = vmatpush2.msra.mxu0 0.0
    %299 = vmatprep.subr.mxu0 0.0
    %300 = vmatpush2.msra.mxu0 0.0
    %301 = vmatprep.subr.mxu0 0.0
    %302 = vmatpush2.msra.mxu0 0.0
    %303 = vmatprep.subr.mxu0 0.0
    %304 = vmatpush2.msra.mxu0 0.0
    %305 = vmatprep.subr.mxu0 0.0
    %306 = vmatpush2.msra.mxu0 0.0
    %307 = vmatprep.mubr.f32.mxu0 0.0
    %308 = vmatmul.mubr.f32.gmra.mxu0 %v232
    %v309 = vpop.f32.mrf.mxu0
    %v310 = vadd.f32 %v213, %v309
    %v311 = vpop.f32.mrf.mxu0
    %312 = vmatprep.mubr.f32.mxu0 0.0
    %313 = vmatmul.mubr.f32.gmra.mxu0 %v235
    %v314 = vpop.f32.mrf.mxu0
    %v315 = vadd.f32 %v218, %v314
    %v316 = vpop.f32.mrf.mxu0
    %317 = vmatprep.mubr.f32.mxu0 0.0
    %318 = vmatmul.mubr.f32.gmra.mxu0 %v238
    %v319 = vpop.f32.mrf.mxu0
    %v320 = vadd.f32 %v223, %v319
    %v321 = vpop.f32.mrf.mxu0
    %322 = vmatprep.mubr.f32.mxu0 0.0
    %323 = vmatmul.mubr.f32.gmra.mxu0 %v241
    %v324 = vpop.f32.mrf.mxu0
    %v325 = vadd.f32 %v228, %v324
    %v326 = vpop.f32.mrf.mxu0
    %327 = vdwg.mxu0
    %v328 = vxor.u32 %v310, 2147483648
    %v329 = vxor.u32 %v315, 2147483648
    %v330 = vxor.u32 %v320, 2147483648
    %v331 = vxor.u32 %v325, 2147483648
    %v332 = vmul.f32 %v328, 1.442695
    %v333 = vpow.pop %v332
    %v334 = vmul.f32 %v329, 1.442695
    %v335 = vpow.pop %v334
    %v336 = vmul.f32 %v330, 1.442695
    %v337 = vpow.pop %v336
    %v338 = vmul.f32 %v331, 1.442695
    %v339 = vpow.pop %v338
    %v340 = vadd.f32 %v333, 1.0
    %v341 = vadd.f32 %v335, 1.0
    %v342 = vadd.f32 %v337, 1.0
    %v343 = vadd.f32 %v339, 1.0
    %v344 = vrcp.pop %v340
    %v345 = vmul.f32 1.0, %v344
    %v346 = vrcp.pop %v341
    %v347 = vmul.f32 1.0, %v346
    %v348 = vrcp.pop %v342
    %v349 = vmul.f32 1.0, %v348
    %v350 = vrcp.pop %v343
    %v351 = vmul.f32 1.0, %v350
    %v352 = vld [vmem:[%s5] sm:$0xff]
    %v353 = vld [vmem:[%s5 + $0x8] sm:$0xff]
    %v354 = vld [vmem:[%s5 + $0x10] sm:$0xff]
    %v355 = vld [vmem:[%s5 + $0x18] sm:$0xff]
    %v356 = vld [vmem:[%s6] sm:$0xff]
    %v357 = vld [vmem:[%s6 + $0x8] sm:$0xff]
    %v358 = vld [vmem:[%s6 + $0x10] sm:$0xff]
    %v359 = vld [vmem:[%s6 + $0x18] sm:$0xff]
    %361 = vset.pattern.permute.xlu0 0
    %362 = vperm.xlu0 %361, %v356
    %v363 = vpop.permute.xlu0 %362
    %366 = vset.pattern.permute.xlu0 0
    %367 = vperm.xlu0 %366, %v357
    %v368 = vpop.permute.xlu0 %367
    %371 = vset.pattern.permute.xlu0 0
    %372 = vperm.xlu0 %371, %v358
    %v373 = vpop.permute.xlu0 %372
    %376 = vset.pattern.permute.xlu0 0
    %377 = vperm.xlu0 %376, %v359
    %v378 = vpop.permute.xlu0 %377
    %v381 = vsel %vm230, %v352, 0
    %v384 = vsel %vm230, %v353, 0
    %v387 = vsel %vm230, %v354, 0
    %v390 = vsel %vm230, %v355, 0
    %392 = vmatprep.subr.mxu0 0.0
    %393 = vmatpush1.msra.mxu0 0.0
    %394 = vmatprep.subr.mxu0 0.0
    %395 = vmatpush1.msra.mxu0 0.0
    %396 = vmatprep.subr.mxu0 0.0
    %397 = vmatpush1.msra.mxu0 0.0
    %398 = vmatprep.subr.mxu0 0.0
    %399 = vmatpush1.msra.mxu0 0.0
    %400 = vmatprep.subr.mxu0 0.0
    %401 = vmatpush1.msra.mxu0 0.0
    %402 = vmatprep.subr.mxu0 0.0
    %403 = vmatpush1.msra.mxu0 0.0
    %404 = vmatprep.subr.mxu0 0.0
    %405 = vmatpush1.msra.mxu0 0.0
    %406 = vmatprep.subr.mxu0 0.0
    %407 = vmatpush1.msra.mxu0 0.0
    %408 = vmatprep.subr.mxu0 0.0
    %409 = vmatpush1.msra.mxu0 0.0
    %410 = vmatprep.subr.mxu0 0.0
    %411 = vmatpush1.msra.mxu0 0.0
    %412 = vmatprep.subr.mxu0 0.0
    %413 = vmatpush1.msra.mxu0 0.0
    %414 = vmatprep.subr.mxu0 0.0
    %415 = vmatpush1.msra.mxu0 0.0
    %416 = vmatprep.subr.mxu0 0.0
    %417 = vmatpush1.msra.mxu0 %v351
    %418 = vmatprep.subr.mxu0 0.0
    %419 = vmatpush1.msra.mxu0 %v349
    %420 = vmatprep.subr.mxu0 0.0
    %421 = vmatpush1.msra.mxu0 %v347
    %422 = vmatprep.subr.mxu0 0.0
    %423 = vmatpush1.msra.mxu0 %v345
    %424 = vmatprep.subr.mxu0 0.0
    %425 = vmatpush2.msra.mxu0 0.0
    %426 = vmatprep.subr.mxu0 0.0
    %427 = vmatpush2.msra.mxu0 0.0
    %428 = vmatprep.subr.mxu0 0.0
    %429 = vmatpush2.msra.mxu0 0.0
    %430 = vmatprep.subr.mxu0 0.0
    %431 = vmatpush2.msra.mxu0 0.0
    %432 = vmatprep.subr.mxu0 0.0
    %433 = vmatpush2.msra.mxu0 0.0
    %434 = vmatprep.subr.mxu0 0.0
    %435 = vmatpush2.msra.mxu0 0.0
    %436 = vmatprep.subr.mxu0 0.0
    %437 = vmatpush2.msra.mxu0 0.0
    %438 = vmatprep.subr.mxu0 0.0
    %439 = vmatpush2.msra.mxu0 0.0
    %440 = vmatprep.subr.mxu0 0.0
    %441 = vmatpush2.msra.mxu0 0.0
    %442 = vmatprep.subr.mxu0 0.0
    %443 = vmatpush2.msra.mxu0 0.0
    %444 = vmatprep.subr.mxu0 0.0
    %445 = vmatpush2.msra.mxu0 0.0
    %446 = vmatprep.subr.mxu0 0.0
    %447 = vmatpush2.msra.mxu0 0.0
    %448 = vmatprep.subr.mxu0 0.0
    %449 = vmatpush2.msra.mxu0 0.0
    %450 = vmatprep.subr.mxu0 0.0
    %451 = vmatpush2.msra.mxu0 0.0
    %452 = vmatprep.subr.mxu0 0.0
    %453 = vmatpush2.msra.mxu0 0.0
    %454 = vmatprep.subr.mxu0 0.0
    %455 = vmatpush2.msra.mxu0 0.0
    %456 = vmatprep.mubr.f32.mxu0 0.0
    %457 = vmatmul.mubr.f32.gmra.mxu0 %v381
    %v458 = vpop.f32.mrf.mxu0
    %v459 = vadd.f32 %v363, %v458
    %v460 = vpop.f32.mrf.mxu0
    %461 = vmatprep.mubr.f32.mxu0 0.0
    %462 = vmatmul.mubr.f32.gmra.mxu0 %v384
    %v463 = vpop.f32.mrf.mxu0
    %v464 = vadd.f32 %v368, %v463
    %v465 = vpop.f32.mrf.mxu0
    %466 = vmatprep.mubr.f32.mxu0 0.0
    %467 = vmatmul.mubr.f32.gmra.mxu0 %v387
    %v468 = vpop.f32.mrf.mxu0
    %v469 = vadd.f32 %v373, %v468
    %v470 = vpop.f32.mrf.mxu0
    %471 = vmatprep.mubr.f32.mxu0 0.0
    %472 = vmatmul.mubr.f32.gmra.mxu0 %v390
    %v473 = vpop.f32.mrf.mxu0
    %v474 = vadd.f32 %v378, %v473
    %v475 = vpop.f32.mrf.mxu0
    %476 = vdwg.mxu0
    %v477 = vxor.u32 %v459, 2147483648
    %v478 = vxor.u32 %v464, 2147483648
    %v479 = vxor.u32 %v469, 2147483648
    %v480 = vxor.u32 %v474, 2147483648
    %v481 = vmul.f32 %v477, 1.442695
    %v482 = vpow.pop %v481
    %v483 = vmul.f32 %v478, 1.442695
    %v484 = vpow.pop %v483
    %v485 = vmul.f32 %v479, 1.442695
    %v486 = vpow.pop %v485
    %v487 = vmul.f32 %v480, 1.442695
    %v488 = vpow.pop %v487
    %v489 = vadd.f32 %v482, 1.0
    %v490 = vadd.f32 %v484, 1.0
    %v491 = vadd.f32 %v486, 1.0
    %v492 = vadd.f32 %v488, 1.0
    %v493 = vrcp.pop %v489
    %v494 = vmul.f32 1.0, %v493
    %v495 = vrcp.pop %v490
    %v496 = vmul.f32 1.0, %v495
    %v497 = vrcp.pop %v491
    %v498 = vmul.f32 1.0, %v497
    %v499 = vrcp.pop %v492
    %v500 = vmul.f32 1.0, %v499
    %v501 = vld [vmem:[%s7] sm:$0xff]
    %v502 = vld [vmem:[%s7 + $0x8] sm:$0xff]
    %v503 = vld [vmem:[%s7 + $0x10] sm:$0xff]
    %v504 = vld [vmem:[%s7 + $0x18] sm:$0xff]
    %v505 = vld [vmem:[%s8] sm:$0xff]
    %v506 = vld [vmem:[%s8 + $0x8] sm:$0xff]
    %v507 = vld [vmem:[%s8 + $0x10] sm:$0xff]
    %v508 = vld [vmem:[%s8 + $0x18] sm:$0xff]
    %510 = vset.pattern.permute.xlu0 0
    %511 = vperm.xlu0 %510, %v505
    %v512 = vpop.permute.xlu0 %511
    %515 = vset.pattern.permute.xlu0 0
    %516 = vperm.xlu0 %515, %v506
    %v517 = vpop.permute.xlu0 %516
    %520 = vset.pattern.permute.xlu0 0
    %521 = vperm.xlu0 %520, %v507
    %v522 = vpop.permute.xlu0 %521
    %525 = vset.pattern.permute.xlu0 0
    %526 = vperm.xlu0 %525, %v508
    %v527 = vpop.permute.xlu0 %526
    %v530 = vsel %vm230, %v501, 0
    %v533 = vsel %vm230, %v502, 0
    %v536 = vsel %vm230, %v503, 0
    %v539 = vsel %vm230, %v504, 0
    %541 = vmatprep.subr.mxu0 0.0
    %542 = vmatpush1.msra.mxu0 0.0
    %543 = vmatprep.subr.mxu0 0.0
    %544 = vmatpush1.msra.mxu0 0.0
    %545 = vmatprep.subr.mxu0 0.0
    %546 = vmatpush1.msra.mxu0 0.0
    %547 = vmatprep.subr.mxu0 0.0
    %548 = vmatpush1.msra.mxu0 0.0
    %549 = vmatprep.subr.mxu0 0.0
    %550 = vmatpush1.msra.mxu0 0.0
    %551 = vmatprep.subr.mxu0 0.0
    %552 = vmatpush1.msra.mxu0 0.0
    %553 = vmatprep.subr.mxu0 0.0
    %554 = vmatpush1.msra.mxu0 0.0
    %555 = vmatprep.subr.mxu0 0.0
    %556 = vmatpush1.msra.mxu0 0.0
    %557 = vmatprep.subr.mxu0 0.0
    %558 = vmatpush1.msra.mxu0 0.0
    %559 = vmatprep.subr.mxu0 0.0
    %560 = vmatpush1.msra.mxu0 0.0
    %561 = vmatprep.subr.mxu0 0.0
    %562 = vmatpush1.msra.mxu0 0.0
    %563 = vmatprep.subr.mxu0 0.0
    %564 = vmatpush1.msra.mxu0 0.0
    %565 = vmatprep.subr.mxu0 0.0
    %566 = vmatpush1.msra.mxu0 %v500
    %567 = vmatprep.subr.mxu0 0.0
    %568 = vmatpush1.msra.mxu0 %v498
    %569 = vmatprep.subr.mxu0 0.0
    %570 = vmatpush1.msra.mxu0 %v496
    %571 = vmatprep.subr.mxu0 0.0
    %572 = vmatpush1.msra.mxu0 %v494
    %573 = vmatprep.subr.mxu0 0.0
    %574 = vmatpush2.msra.mxu0 0.0
    %575 = vmatprep.subr.mxu0 0.0
    %576 = vmatpush2.msra.mxu0 0.0
    %577 = vmatprep.subr.mxu0 0.0
    %578 = vmatpush2.msra.mxu0 0.0
    %579 = vmatprep.subr.mxu0 0.0
    %580 = vmatpush2.msra.mxu0 0.0
    %581 = vmatprep.subr.mxu0 0.0
    %582 = vmatpush2.msra.mxu0 0.0
    %583 = vmatprep.subr.mxu0 0.0
    %584 = vmatpush2.msra.mxu0 0.0
    %585 = vmatprep.subr.mxu0 0.0
    %586 = vmatpush2.msra.mxu0 0.0
    %587 = vmatprep.subr.mxu0 0.0
    %588 = vmatpush2.msra.mxu0 0.0
    %589 = vmatprep.subr.mxu0 0.0
    %590 = vmatpush2.msra.mxu0 0.0
    %591 = vmatprep.subr.mxu0 0.0
    %592 = vmatpush2.msra.mxu0 0.0
    %593 = vmatprep.subr.mxu0 0.0
    %594 = vmatpush2.msra.mxu0 0.0
    %595 = vmatprep.subr.mxu0 0.0
    %596 = vmatpush2.msra.mxu0 0.0
    %597 = vmatprep.subr.mxu0 0.0
    %598 = vmatpush2.msra.mxu0 0.0
    %599 = vmatprep.subr.mxu0 0.0
    %600 = vmatpush2.msra.mxu0 0.0
    %601 = vmatprep.subr.mxu0 0.0
    %602 = vmatpush2.msra.mxu0 0.0
    %603 = vmatprep.subr.mxu0 0.0
    %604 = vmatpush2.msra.mxu0 0.0
    %605 = vmatprep.mubr.f32.mxu0 0.0
    %606 = vmatmul.mubr.f32.gmra.mxu0 %v530
    %v607 = vpop.f32.mrf.mxu0
    %v608 = vadd.f32 %v512, %v607
    %v609 = vpop.f32.mrf.mxu0
    %610 = vmatprep.mubr.f32.mxu0 0.0
    %611 = vmatmul.mubr.f32.gmra.mxu0 %v533
    %v612 = vpop.f32.mrf.mxu0
    %v613 = vadd.f32 %v517, %v612
    %v614 = vpop.f32.mrf.mxu0
    %615 = vmatprep.mubr.f32.mxu0 0.0
    %616 = vmatmul.mubr.f32.gmra.mxu0 %v536
    %v617 = vpop.f32.mrf.mxu0
    %v618 = vadd.f32 %v522, %v617
    %v619 = vpop.f32.mrf.mxu0
    %620 = vmatprep.mubr.f32.mxu0 0.0
    %621 = vmatmul.mubr.f32.gmra.mxu0 %v539
    %v622 = vpop.f32.mrf.mxu0
    %v623 = vadd.f32 %v527, %v622
    %v624 = vpop.f32.mrf.mxu0
    %625 = vdwg.mxu0
    %v626 = vxor.u32 %v608, 2147483648
    %v627 = vxor.u32 %v613, 2147483648
    %v628 = vxor.u32 %v618, 2147483648
    %v629 = vxor.u32 %v623, 2147483648
    %v630 = vmul.f32 %v626, 1.442695
    %v631 = vpow.pop %v630
    %v632 = vmul.f32 %v627, 1.442695
    %v633 = vpow.pop %v632
    %v634 = vmul.f32 %v628, 1.442695
    %v635 = vpow.pop %v634
    %v636 = vmul.f32 %v629, 1.442695
    %v637 = vpow.pop %v636
    %v638 = vadd.f32 %v631, 1.0
    %v639 = vadd.f32 %v633, 1.0
    %v640 = vadd.f32 %v635, 1.0
    %v641 = vadd.f32 %v637, 1.0
    %v642 = vrcp.pop %v638
    %v643 = vmul.f32 1.0, %v642
    %v644 = vrcp.pop %v639
    %v645 = vmul.f32 1.0, %v644
    %v646 = vrcp.pop %v640
    %v647 = vmul.f32 1.0, %v646
    %v648 = vrcp.pop %v641
    %v649 = vmul.f32 1.0, %v648
    %v650 = vld [vmem:[%s9] sm:$0xff]
    %v651 = vld [vmem:[%s9 + $0x8] sm:$0xff]
    %v652 = vld [vmem:[%s9 + $0x10] sm:$0xff]
    %v653 = vld [vmem:[%s9 + $0x18] sm:$0xff]
    %v654 = vld [vmem:[%s10] sm:$0xff]
    %v655 = vld [vmem:[%s10 + $0x8] sm:$0xff]
    %v656 = vld [vmem:[%s10 + $0x10] sm:$0xff]
    %v657 = vld [vmem:[%s10 + $0x18] sm:$0xff]
    %659 = vset.pattern.permute.xlu0 0
    %660 = vperm.xlu0 %659, %v654
    %v661 = vpop.permute.xlu0 %660
    %664 = vset.pattern.permute.xlu0 0
    %665 = vperm.xlu0 %664, %v655
    %v666 = vpop.permute.xlu0 %665
    %669 = vset.pattern.permute.xlu0 0
    %670 = vperm.xlu0 %669, %v656
    %v671 = vpop.permute.xlu0 %670
    %674 = vset.pattern.permute.xlu0 0
    %675 = vperm.xlu0 %674, %v657
    %v676 = vpop.permute.xlu0 %675
    %v679 = vsel %vm230, %v650, 0
    %v682 = vsel %vm230, %v651, 0
    %v685 = vsel %vm230, %v652, 0
    %v688 = vsel %vm230, %v653, 0
    %690 = vmatprep.subr.mxu0 0.0
    %691 = vmatpush1.msra.mxu0 0.0
    %692 = vmatprep.subr.mxu0 0.0
    %693 = vmatpush1.msra.mxu0 0.0
    %694 = vmatprep.subr.mxu0 0.0
    %695 = vmatpush1.msra.mxu0 0.0
    %696 = vmatprep.subr.mxu0 0.0
    %697 = vmatpush1.msra.mxu0 0.0
    %698 = vmatprep.subr.mxu0 0.0
    %699 = vmatpush1.msra.mxu0 0.0
    %700 = vmatprep.subr.mxu0 0.0
    %701 = vmatpush1.msra.mxu0 0.0
    %702 = vmatprep.subr.mxu0 0.0
    %703 = vmatpush1.msra.mxu0 0.0
    %704 = vmatprep.subr.mxu0 0.0
    %705 = vmatpush1.msra.mxu0 0.0
    %706 = vmatprep.subr.mxu0 0.0
    %707 = vmatpush1.msra.mxu0 0.0
    %708 = vmatprep.subr.mxu0 0.0
    %709 = vmatpush1.msra.mxu0 0.0
    %710 = vmatprep.subr.mxu0 0.0
    %711 = vmatpush1.msra.mxu0 0.0
    %712 = vmatprep.subr.mxu0 0.0
    %713 = vmatpush1.msra.mxu0 0.0
    %714 = vmatprep.subr.mxu0 0.0
    %715 = vmatpush1.msra.mxu0 %v649
    %716 = vmatprep.subr.mxu0 0.0
    %717 = vmatpush1.msra.mxu0 %v647
    %718 = vmatprep.subr.mxu0 0.0
    %719 = vmatpush1.msra.mxu0 %v645
    %720 = vmatprep.subr.mxu0 0.0
    %721 = vmatpush1.msra.mxu0 %v643
    %722 = vmatprep.subr.mxu0 0.0
    %723 = vmatpush2.msra.mxu0 0.0
    %724 = vmatprep.subr.mxu0 0.0
    %725 = vmatpush2.msra.mxu0 0.0
    %726 = vmatprep.subr.mxu0 0.0
    %727 = vmatpush2.msra.mxu0 0.0
    %728 = vmatprep.subr.mxu0 0.0
    %729 = vmatpush2.msra.mxu0 0.0
    %730 = vmatprep.subr.mxu0 0.0
    %731 = vmatpush2.msra.mxu0 0.0
    %732 = vmatprep.subr.mxu0 0.0
    %733 = vmatpush2.msra.mxu0 0.0
    %734 = vmatprep.subr.mxu0 0.0
    %735 = vmatpush2.msra.mxu0 0.0
    %736 = vmatprep.subr.mxu0 0.0
    %737 = vmatpush2.msra.mxu0 0.0
    %738 = vmatprep.subr.mxu0 0.0
    %739 = vmatpush2.msra.mxu0 0.0
    %740 = vmatprep.subr.mxu0 0.0
    %741 = vmatpush2.msra.mxu0 0.0
    %742 = vmatprep.subr.mxu0 0.0
    %743 = vmatpush2.msra.mxu0 0.0
    %744 = vmatprep.subr.mxu0 0.0
    %745 = vmatpush2.msra.mxu0 0.0
    %746 = vmatprep.subr.mxu0 0.0
    %747 = vmatpush2.msra.mxu0 0.0
    %748 = vmatprep.subr.mxu0 0.0
    %749 = vmatpush2.msra.mxu0 0.0
    %750 = vmatprep.subr.mxu0 0.0
    %751 = vmatpush2.msra.mxu0 0.0
    %752 = vmatprep.subr.mxu0 0.0
    %753 = vmatpush2.msra.mxu0 0.0
    %754 = vmatprep.mubr.f32.mxu0 0.0
    %755 = vmatmul.mubr.f32.gmra.mxu0 %v679
    %v756 = vpop.f32.mrf.mxu0
    %v757 = vadd.f32 %v661, %v756
    %v758 = vpop.f32.mrf.mxu0
    %759 = vmatprep.mubr.f32.mxu0 0.0
    %760 = vmatmul.mubr.f32.gmra.mxu0 %v682
    %v761 = vpop.f32.mrf.mxu0
    %v762 = vadd.f32 %v666, %v761
    %v763 = vpop.f32.mrf.mxu0
    %764 = vmatprep.mubr.f32.mxu0 0.0
    %765 = vmatmul.mubr.f32.gmra.mxu0 %v685
    %v766 = vpop.f32.mrf.mxu0
    %v767 = vadd.f32 %v671, %v766
    %v768 = vpop.f32.mrf.mxu0
    %769 = vmatprep.mubr.f32.mxu0 0.0
    %770 = vmatmul.mubr.f32.gmra.mxu0 %v688
    %v771 = vpop.f32.mrf.mxu0
    %v772 = vadd.f32 %v676, %v771
    %v773 = vpop.f32.mrf.mxu0
    %774 = vdwg.mxu0
    %v775 = vxor.u32 %v757, 2147483648
    %v776 = vxor.u32 %v762, 2147483648
    %v777 = vxor.u32 %v767, 2147483648
    %v778 = vxor.u32 %v772, 2147483648
    %v779 = vmul.f32 %v775, 1.442695
    %v780 = vpow.pop %v779
    %v781 = vmul.f32 %v776, 1.442695
    %v782 = vpow.pop %v781
    %v783 = vmul.f32 %v777, 1.442695
    %v784 = vpow.pop %v783
    %v785 = vmul.f32 %v778, 1.442695
    %v786 = vpow.pop %v785
    %v787 = vadd.f32 %v780, 1.0
    %v788 = vadd.f32 %v782, 1.0
    %v789 = vadd.f32 %v784, 1.0
    %v790 = vadd.f32 %v786, 1.0
    %v791 = vrcp.pop %v787
    %v792 = vmul.f32 1.0, %v791
    %v793 = vrcp.pop %v788
    %v794 = vmul.f32 1.0, %v793
    %v795 = vrcp.pop %v789
    %v796 = vmul.f32 1.0, %v795
    %v797 = vrcp.pop %v790
    %v798 = vmul.f32 1.0, %v797
    %v799 = vld [vmem:[%s11] sm:$0x1]
    %v800 = vld [vmem:[#allocation2] sm:$0x1]
    %802 = vset.pattern.permute.xlu0 0
    %803 = vperm.xlu0 %802, %v800
    %v804 = vpop.permute.xlu0 %803
    %v806 = vlaneseq
    %v807 = vshrl.u32 %v806, 7
    %v808 = vsub.s32 0, %v807
    %v809 = vrot.slane %v804, %v808
    %v811 = vsel %vm230, %v799, 0
    %813 = vmatprep.subr.mxu0 0.0
    %814 = vmatpush1.msra.mxu0 0.0
    %815 = vmatprep.subr.mxu0 0.0
    %816 = vmatpush1.msra.mxu0 0.0
    %817 = vmatprep.subr.mxu0 0.0
    %818 = vmatpush1.msra.mxu0 0.0
    %819 = vmatprep.subr.mxu0 0.0
    %820 = vmatpush1.msra.mxu0 0.0
    %821 = vmatprep.subr.mxu0 0.0
    %822 = vmatpush1.msra.mxu0 0.0
    %823 = vmatprep.subr.mxu0 0.0
    %824 = vmatpush1.msra.mxu0 0.0
    %825 = vmatprep.subr.mxu0 0.0
    %826 = vmatpush1.msra.mxu0 0.0
    %827 = vmatprep.subr.mxu0 0.0
    %828 = vmatpush1.msra.mxu0 0.0
    %829 = vmatprep.subr.mxu0 0.0
    %830 = vmatpush1.msra.mxu0 0.0
    %831 = vmatprep.subr.mxu0 0.0
    %832 = vmatpush1.msra.mxu0 0.0
    %833 = vmatprep.subr.mxu0 0.0
    %834 = vmatpush1.msra.mxu0 0.0
    %835 = vmatprep.subr.mxu0 0.0
    %836 = vmatpush1.msra.mxu0 0.0
    %837 = vmatprep.subr.mxu0 0.0
    %838 = vmatpush1.msra.mxu0 %v798
    %839 = vmatprep.subr.mxu0 0.0
    %840 = vmatpush1.msra.mxu0 %v796
    %841 = vmatprep.subr.mxu0 0.0
    %842 = vmatpush1.msra.mxu0 %v794
    %843 = vmatprep.subr.mxu0 0.0
    %844 = vmatpush1.msra.mxu0 %v792
    %845 = vmatprep.subr.mxu0 0.0
    %846 = vmatpush2.msra.mxu0 0.0
    %847 = vmatprep.subr.mxu0 0.0
    %848 = vmatpush2.msra.mxu0 0.0
    %849 = vmatprep.subr.mxu0 0.0
    %850 = vmatpush2.msra.mxu0 0.0
    %851 = vmatprep.subr.mxu0 0.0
    %852 = vmatpush2.msra.mxu0 0.0
    %853 = vmatprep.subr.mxu0 0.0
    %854 = vmatpush2.msra.mxu0 0.0
    %855 = vmatprep.subr.mxu0 0.0
    %856 = vmatpush2.msra.mxu0 0.0
    %857 = vmatprep.subr.mxu0 0.0
    %858 = vmatpush2.msra.mxu0 0.0
    %859 = vmatprep.subr.mxu0 0.0
    %860 = vmatpush2.msra.mxu0 0.0
    %861 = vmatprep.subr.mxu0 0.0
    %862 = vmatpush2.msra.mxu0 0.0
    %863 = vmatprep.subr.mxu0 0.0
    %864 = vmatpush2.msra.mxu0 0.0
    %865 = vmatprep.subr.mxu0 0.0
    %866 = vmatpush2.msra.mxu0 0.0
    %867 = vmatprep.subr.mxu0 0.0
    %868 = vmatpush2.msra.mxu0 0.0
    %869 = vmatprep.subr.mxu0 0.0
    %870 = vmatpush2.msra.mxu0 0.0
    %871 = vmatprep.subr.mxu0 0.0
    %872 = vmatpush2.msra.mxu0 0.0
    %873 = vmatprep.subr.mxu0 0.0
    %874 = vmatpush2.msra.mxu0 0.0
    %875 = vmatprep.subr.mxu0 0.0
    %876 = vmatpush2.msra.mxu0 0.0
    %877 = vmatprep.mubr.f32.mxu0 0.0
    %878 = vmatmul.mubr.f32.gmra.mxu0 %v811
    %v879 = vpop.f32.mrf.mxu0
    %v880 = vadd.f32 %v809, %v879
    %v881 = vpop.f32.mrf.mxu0
    %882 = vdwg.mxu0
    %883 = vst [vmem:[#allocation3] sm:$0x1] %v880
    // Predicated region
    $region54: #{tpu_custom_call.1} parent=1 // pred_check
      _
    $region55: #{tpu_custom_call.1} parent=1 // pred_check_branch
      %885 = sbr.rel (0) target = $region57
    $region56: #{tpu_custom_call.1} parent=1 // pred_region
      %s887 = ssub.s32 16, 16
      %888 = vsyncadd [#allocation4], %s887
      %s890 = sshll.u32 [#allocation3], 4
      %s891 = int_to_ptr.vmem [resolvable:$true] %s890
      %893 = dma.vmem_to_hbm [thread:$0]  %s891, 16, %s13, [#allocation4]
    $region57: #{tpu_custom_call.1} parent=1 // pred_fallthru
      _
    // Predicated region
    $region58: #{tpu_custom_call.1} parent=1 // pred_check
      _
    $region59: #{tpu_custom_call.1} parent=1 // pred_check_branch
      %895 = sbr.rel (0) target = $region61
    $region60: #{tpu_custom_call.1} parent=1 // pred_region
      %896 = dma.done [#allocation4], 16
    $region61: #{tpu_custom_call.1} parent=1 // pred_fallthru
      _
    %897 = vsyncpa [#allocation4], 1

</llo_original>
